<compile_context>
chip_gen: v5e
topology: v5e:2x2
jax: 0.10.0
libtpu: 0.0.40
codegen_flags: <defaults>
</compile_context>

<pallas_src>
import functools
import math

import jax
import jax.numpy as jnp
from jax import lax
from jax.experimental import pallas as pl
from jax.experimental.pallas import tpu as pltpu


def _rce_tile_kernel(s_ref, d_ref, lse_ref, diag_ref, mref_ref, csum_ref, *,
                     inv_tau: float):
    """One (TM, Np) row tile plus its (TM, TM) diagonal block.

    Per-tile outputs:
      lse_ref  (1, TM, 1): row log-sum-exp of s/tau
      diag_ref (1, TM, 1): diagonal entries s_ii/tau for these rows
      mref_ref (1, 1, 1) : tile-wide max of s/tau (reference for csum)
      csum_ref (1, 1, Np): column partial sums  sum_i exp(s_ij/tau - m)
    """
    s = s_ref[...].astype(jnp.float32) * inv_tau                 # (TM, Np)

    # Row log-sum-exp, stabilized by the per-row max (single big EUP pass).
    row_max = jnp.max(s, axis=1, keepdims=True)                  # (TM, 1)
    p = jnp.exp(s - row_max)                                     # (TM, Np)
    row_sum = jnp.sum(p, axis=1, keepdims=True)                  # (TM, 1)
    lse_ref[0] = row_max + jnp.log(row_sum)                      # (TM, 1)

    # Column partial sums referenced to the per-tile max m (scalar output;
    # the cross-tile merge happens in the wrapper):
    #   sum_i exp(s_ij - m) = sum_i p_ij * exp(row_max_i - m)
    # Reuses p -> no second full-tile exp; only TM extra exps.
    m = jnp.max(row_max, axis=0, keepdims=True)                  # (1, 1)
    w = jnp.exp(row_max - m)                                     # (TM, 1)
    mref_ref[0] = m
    csum_ref[0] = jnp.sum(p * w, axis=0, keepdims=True)          # (1, Np)

    # Diagonal of s/tau from the small (TM, TM) diagonal block: iota/where on
    # TM*TM elements instead of TM*Np -> Np/TM x less VALU/XLU work and VMEM.
    sd = d_ref[...].astype(jnp.float32) * inv_tau                # (TM, TM)
    rr = lax.broadcasted_iota(jnp.int32, sd.shape, 0)
    cc = lax.broadcasted_iota(jnp.int32, sd.shape, 1)
    diag_ref[0] = jnp.sum(jnp.where(rr == cc, sd, 0.0),
                          axis=1, keepdims=True)                 # (TM, 1)


def _pick_tile(n: int) -> int:
    """Row-tile size: biggest of {512, 256, 128} under ~4 MiB of f32 per tile.

    Preference order: exact division of N (no padding copy), then an even tile
    count >= 2 (both v7x TensorCores busy), then the largest tile.
    """
    if n <= 128:
        return n                                  # single whole-matrix block
    cap = max(128, (4 * 1024 * 1024) // (4 * n))  # ~4 MiB f32 row tile
    cands = [t for t in (512, 256, 128) if t <= cap and t <= n]
    if not cands:
        # Very large N (> ~8 K): fall back to 128-row tiles; raise the VMEM
        # budget upstream if this path is ever hot.
        cands = [128]

    def score(t):
        nb = -(-n // t)
        return (n % t != 0,                 # prefer exact division
                nb % 2 != 0 or nb < 2,      # prefer even tile count >= 2
                -t)                         # prefer larger tiles

    return min(cands, key=score)


@functools.partial(jax.jit, static_argnames=("tau", "eps"))
def rce_loss(scores: jax.Array, tau: float = 0.1, eps: float = 1e-7) -> jax.Array:
    n = scores.shape[0]
    assert scores.ndim == 2 and scores.shape == (n, n), "RCE expects [N, N] scores"

    tm = _pick_tile(n)
    nb = -(-n // tm)
    npad = nb * tm
    if npad != n:
        # Pad once with a very negative constant: padded rows / columns then
        # contribute exactly 0 to every exp-sum and need no in-kernel masking.
        scores_p = jnp.pad(scores, ((0, npad - n), (0, npad - n)),
                           constant_values=-1e30)
    else:
        scores_p = scores

    kernel = functools.partial(_rce_tile_kernel, inv_tau=float(1.0 / tau))
    lse_row, diag, tile_max, tile_sum = pl.pallas_call(
        kernel,
        out_shape=(
            jax.ShapeDtypeStruct((nb, tm, 1), jnp.float32),   # per-row LSE
            jax.ShapeDtypeStruct((nb, tm, 1), jnp.float32),   # diag(s)/tau
            jax.ShapeDtypeStruct((nb, 1, 1), jnp.float32),    # per-tile max
            jax.ShapeDtypeStruct((nb, 1, npad), jnp.float32), # per-tile column sums
        ),
        grid=(nb,),
        in_specs=[
            pl.BlockSpec((tm, npad), lambda i: (i, 0)),   # full row tile
            pl.BlockSpec((tm, tm), lambda i: (i, i)),     # diagonal block
        ],
        out_specs=(
            pl.BlockSpec((1, tm, 1), lambda i: (i, 0, 0)),
            pl.BlockSpec((1, tm, 1), lambda i: (i, 0, 0)),
            pl.BlockSpec((1, 1, 1), lambda i: (i, 0, 0)),
            pl.BlockSpec((1, 1, npad), lambda i: (i, 0, 0)),
        ),
        compiler_params=pltpu.CompilerParams(
            dimension_semantics=("parallel",),   # independent row tiles
            vmem_limit_bytes=32 * 1024 * 1024,   # safe on v5e / v6e / v7x
        ),
    )(scores_p, scores_p)

    # O(N) finalization: cross-tile column-LSE merge + scalar loss.
    lse_r = lse_row.reshape(npad)[:n]            # log sum_j exp(s_ij / tau)
    d = diag.reshape(npad)[:n]                   # s_ii / tau
    m_t = tile_max.reshape(nb, 1)                # per-tile max
    csum = tile_sum.reshape(nb, npad)[:, :n]     # per-tile column partial sums

    g_max = jnp.max(m_t)
    lse_c = g_max + jnp.log(jnp.sum(csum * jnp.exp(m_t - g_max), axis=0))  # (N,)

    inv_n = jnp.float32(1.0 / n)
    log_eps = jnp.float32(math.log(eps))
    dlog = jnp.float32(math.log1p(eps) - math.log(eps))

    trace_i2t = jnp.sum(jnp.exp(d - lse_r))      # = sum_i i2t[i, i]
    trace_t2i = jnp.sum(jnp.exp(d - lse_c))      # = sum_i t2i[i, i]

    cost_i2t_r = -(log_eps + dlog * trace_i2t * inv_n)
    cost_t2i_r = -(log_eps + dlog * trace_t2i * inv_n)
    cost_i2t = jnp.sum(lse_r - d) * inv_n        # = -mean(log diag(i2t))
    cost_t2i = jnp.sum(lse_c - d) * inv_n        # = -mean(log diag(t2i))

    return 0.5 * (cost_i2t_r + cost_t2i_r + cost_i2t + cost_t2i)


def _rce_reference(scores: jax.Array, tau: float = 0.1, eps: float = 1e-7) -> jax.Array:
    """Direct port of the PyTorch module (unstabilized), for checking.

    Note: overflows for |s|/tau >~ 88; the test inputs stay well below that.
    """
    n = scores.shape[0]
    mask = jnp.eye(n, dtype=jnp.float32) + eps
    e = jnp.exp(scores.astype(jnp.float32) / tau)
    i2t = e / e.sum(1, keepdims=True)
    t2i = e.T / e.T.sum(1, keepdims=True)
    cost_i2t_r = -(jnp.log(mask) * i2t).sum(1).mean()
    cost_t2i_r = -(jnp.log(mask) * t2i).sum(1).mean()
    cost_i2t = -jnp.log(jnp.diag(i2t)).mean()
    cost_t2i = -jnp.log(jnp.diag(t2i)).mean()
    return 0.5 * (cost_i2t_r + cost_t2i_r + cost_i2t + cost_t2i)


if __name__ == "__main__":
    key = jax.random.PRNGKey(0)
    # N=8   : the module's batch-of-pairs usage (single whole-matrix block).
    # N=200 : non-divisible N -> padded-to-256, two 128-row tiles.
    # N=384 : multi-tile streaming path (3 x 128-row tiles, exact division).
    for n in (8, 200, 384):
        scores = jax.random.normal(jax.random.fold_in(key, n), (n, n),
                                   dtype=jnp.float32)
        loss = jax.block_until_ready(rce_loss(scores, tau=0.1))
        ref = jax.block_until_ready(_rce_reference(scores, tau=0.1))
        assert jnp.isfinite(loss), f"loss not finite at N={n}"
        assert jnp.allclose(loss, ref, rtol=1e-3, atol=1e-3), (n, loss, ref)
    print("KERNEL_OK")
</pallas_src>

<mosaic_0001>
module attributes {stable_mosaic.version = 11 : i64} {
  func.func @_rce_tile_kernel(%arg0: i32, %arg1: memref<8x8xf32, #tpu.memory_space<vmem>>, %arg2: memref<8x8xf32, #tpu.memory_space<vmem>>, %arg3: memref<1x8x1xf32, #tpu.memory_space<vmem>>, %arg4: memref<1x8x1xf32, #tpu.memory_space<vmem>>, %arg5: memref<1x1x1xf32, #tpu.memory_space<vmem>>, %arg6: memref<1x1x8xf32, #tpu.memory_space<vmem>>) attributes {dimension_semantics = [#tpu.dimension_semantics<parallel>], iteration_bounds = array<i64: 1>, scalar_prefetch = 0 : i64, scratch_operands = 0 : i64, tpu.core_type = #tpu.core_type<tc>, window_params = [{transform_indices = @transform_0, window_bounds = array<i64: 8, 8>}, {transform_indices = @transform_1, window_bounds = array<i64: 8, 8>}, {transform_indices = @transform_2, window_bounds = array<i64: 1, 8, 1>}, {transform_indices = @transform_3, window_bounds = array<i64: 1, 8, 1>}, {transform_indices = @transform_4, window_bounds = array<i64: 1, 1, 1>}, {transform_indices = @transform_5, window_bounds = array<i64: 1, 1, 8>}]} {
    %c0 = arith.constant 0 : index
    %c0_0 = arith.constant 0 : index
    %0 = vector.load %arg1[%c0, %c0_0] : memref<8x8xf32, #tpu.memory_space<vmem>>, vector<8x8xf32>
    %cst = arith.constant 1.000000e+01 : f32
    %1 = vector.broadcast %cst : f32 to vector<8x8xf32>
    %2 = arith.mulf %0, %1 : vector<8x8xf32>
    %cst_1 = arith.constant dense<0xFF800000> : vector<8xf32>
    %3 = vector.multi_reduction <maximumf>, %2, %cst_1 [1] : vector<8x8xf32> to vector<8xf32>
    %4 = vector.shape_cast %3 : vector<8xf32> to vector<8x1xf32>
    %5 = vector.broadcast %4 : vector<8x1xf32> to vector<8x8xf32>
    %6 = arith.subf %2, %5 : vector<8x8xf32>
    %7 = math.exp %6 : vector<8x8xf32>
    %cst_2 = arith.constant dense<0.000000e+00> : vector<8xf32>
    %8 = vector.multi_reduction <add>, %7, %cst_2 [1] : vector<8x8xf32> to vector<8xf32>
    %9 = vector.shape_cast %8 : vector<8xf32> to vector<8x1xf32>
    %10 = math.log %9 : vector<8x1xf32>
    %11 = arith.addf %4, %10 : vector<8x1xf32>
    %c0_3 = arith.constant 0 : index
    %c0_4 = arith.constant 0 : index
    %c0_5 = arith.constant 0 : index
    %12 = vector.load %arg3[%c0_3, %c0_4, %c0_5] : memref<1x8x1xf32, #tpu.memory_space<vmem>>, vector<1x8x1xf32>
    %13 = vector.shape_cast %12 : vector<1x8x1xf32> to vector<8x1xf32>
    %14 = vector.shape_cast %11 : vector<8x1xf32> to vector<1x8x1xf32>
    tpu.vector_store %arg3[%c0_3, %c0_4, %c0_5], %14 {strides = array<i32>} : memref<1x8x1xf32, #tpu.memory_space<vmem>>, vector<1x8x1xf32>,
    %cst_6 = arith.constant dense<0xFF800000> : vector<1xf32>
    %15 = vector.multi_reduction <maximumf>, %4, %cst_6 [0] : vector<8x1xf32> to vector<1xf32>
    %16 = vector.shape_cast %15 : vector<1xf32> to vector<1x1xf32>
    %17 = vector.broadcast %16 : vector<1x1xf32> to vector<8x1xf32>
    %18 = arith.subf %4, %17 : vector<8x1xf32>
    %19 = math.exp %18 : vector<8x1xf32>
    %c0_7 = arith.constant 0 : index
    %c0_8 = arith.constant 0 : index
    %c0_9 = arith.constant 0 : index
    %20 = vector.load %arg5[%c0_7, %c0_8, %c0_9] : memref<1x1x1xf32, #tpu.memory_space<vmem>>, vector<1x1x1xf32>
    %21 = vector.shape_cast %20 : vector<1x1x1xf32> to vector<1x1xf32>
    %22 = vector.shape_cast %16 : vector<1x1xf32> to vector<1x1x1xf32>
    tpu.vector_store %arg5[%c0_7, %c0_8, %c0_9], %22 {strides = array<i32>} : memref<1x1x1xf32, #tpu.memory_space<vmem>>, vector<1x1x1xf32>,
    %23 = vector.broadcast %19 : vector<8x1xf32> to vector<8x8xf32>
    %24 = arith.mulf %7, %23 : vector<8x8xf32>
    %cst_10 = arith.constant dense<0.000000e+00> : vector<8xf32>
    %25 = vector.multi_reduction <add>, %24, %cst_10 [0] : vector<8x8xf32> to vector<8xf32>
    %26 = vector.shape_cast %25 : vector<8xf32> to vector<1x8xf32>
    %c0_11 = arith.constant 0 : index
    %c0_12 = arith.constant 0 : index
    %c0_13 = arith.constant 0 : index
    %27 = vector.load %arg6[%c0_11, %c0_12, %c0_13] : memref<1x1x8xf32, #tpu.memory_space<vmem>>, vector<1x1x8xf32>
    %28 = vector.shape_cast %27 : vector<1x1x8xf32> to vector<1x8xf32>
    %29 = vector.shape_cast %26 : vector<1x8xf32> to vector<1x1x8xf32>
    tpu.vector_store %arg6[%c0_11, %c0_12, %c0_13], %29 {strides = array<i32>} : memref<1x1x8xf32, #tpu.memory_space<vmem>>, vector<1x1x8xf32>,
    %c0_14 = arith.constant 0 : index
    %c0_15 = arith.constant 0 : index
    %30 = vector.load %arg2[%c0_14, %c0_15] : memref<8x8xf32, #tpu.memory_space<vmem>>, vector<8x8xf32>
    %cst_16 = arith.constant 1.000000e+01 : f32
    %31 = vector.broadcast %cst_16 : f32 to vector<8x8xf32>
    %32 = arith.mulf %30, %31 : vector<8x8xf32>
    %33 = tpu.iota {dimensions = array<i32: 0>} : vector<8x8xi32>
    %34 = tpu.iota {dimensions = array<i32: 1>} : vector<8x8xi32>
    %35 = arith.cmpi eq, %33, %34 : vector<8x8xi32>
    %cst_17 = arith.constant 0.000000e+00 : f32
    %36 = vector.broadcast %cst_17 : f32 to vector<8x8xf32>
    %37 = arith.select %35, %32, %36 : vector<8x8xi1>, vector<8x8xf32>
    %cst_18 = arith.constant dense<0.000000e+00> : vector<8xf32>
    %38 = vector.multi_reduction <add>, %37, %cst_18 [1] : vector<8x8xf32> to vector<8xf32>
    %39 = vector.shape_cast %38 : vector<8xf32> to vector<8x1xf32>
    %c0_19 = arith.constant 0 : index
    %c0_20 = arith.constant 0 : index
    %c0_21 = arith.constant 0 : index
    %40 = vector.load %arg4[%c0_19, %c0_20, %c0_21] : memref<1x8x1xf32, #tpu.memory_space<vmem>>, vector<1x8x1xf32>
    %41 = vector.shape_cast %40 : vector<1x8x1xf32> to vector<8x1xf32>
    %42 = vector.shape_cast %39 : vector<8x1xf32> to vector<1x8x1xf32>
    tpu.vector_store %arg4[%c0_19, %c0_20, %c0_21], %42 {strides = array<i32>} : memref<1x8x1xf32, #tpu.memory_space<vmem>>, vector<1x8x1xf32>,
    return
  }
  func.func @transform_0(%arg0: i32) -> (i32, i32) {
    %c0_i32 = arith.constant 0 : i32
    %c0_i32_0 = arith.constant 0 : i32
    return %arg0, %c0_i32 : i32, i32
  }
  func.func @transform_1(%arg0: i32) -> (i32, i32) {
    %c0_i32 = arith.constant 0 : i32
    return %arg0, %arg0 : i32, i32
  }
  func.func @transform_2(%arg0: i32) -> (i32, i32, i32) {
    %c0_i32 = arith.constant 0 : i32
    %c0_i32_0 = arith.constant 0 : i32
    %c0_i32_1 = arith.constant 0 : i32
    return %arg0, %c0_i32, %c0_i32_0 : i32, i32, i32
  }
  func.func @transform_3(%arg0: i32) -> (i32, i32, i32) {
    %c0_i32 = arith.constant 0 : i32
    %c0_i32_0 = arith.constant 0 : i32
    %c0_i32_1 = arith.constant 0 : i32
    return %arg0, %c0_i32, %c0_i32_0 : i32, i32, i32
  }
  func.func @transform_4(%arg0: i32) -> (i32, i32, i32) {
    %c0_i32 = arith.constant 0 : i32
    %c0_i32_0 = arith.constant 0 : i32
    %c0_i32_1 = arith.constant 0 : i32
    return %arg0, %c0_i32, %c0_i32_0 : i32, i32, i32
  }
  func.func @transform_5(%arg0: i32) -> (i32, i32, i32) {
    %c0_i32 = arith.constant 0 : i32
    %c0_i32_0 = arith.constant 0 : i32
    %c0_i32_1 = arith.constant 0 : i32
    return %arg0, %c0_i32, %c0_i32_0 : i32, i32, i32
  }
}

</mosaic_0001>

<llo_original>
// kernel: rce_loss.1
$region0: #{rce_loss.1}
  #allocation0 [shape = 'u32[]', space=smem, size = 0x4, offset = 0x4, fixed_abs, tag = 'smem constant byte address 0x4 - core index']
  #allocation1 [shape = 'u32[72,128]{1,0:T(1,128)}', space=vmem, size = 0x9000, scoped, tag = 'internal scratch']
  %s0 = inlined_call_operand.hbm [shape: f32[8,8], index: 0, kind: input, shape index: {}, may-alias: {0,1}]
  %s1 = inlined_call_operand.hbm [shape: f32[8,8], index: 1, kind: input, shape index: {}, may-alias: {0,1}]
  %s2 = inlined_call_operand.vmem [shape: f32[1,8,1], index: 2, kind: output, shape index: {0}]
  %s3 = inlined_call_operand.vmem [shape: f32[1,8,1], index: 3, kind: output, shape index: {1}]
  %s4 = inlined_call_operand.hbm [shape: f32[1,1,1], index: 4, kind: output, shape index: {2}]
  %s5 = inlined_call_operand.vmem [shape: f32[1,1,8], index: 5, kind: output, shape index: {3}]
  %6 = xla_tuple %s2, %s3, %s4, %s5
  %s7 = sld [smem:[#allocation0]]
  $region50: #{rce_loss.1} parent=0
    _
  %s9 = ssub.s32 1, %s7
  %s10 = scalar_select 0, %s9, %s7
  $region1: #{rce_loss.1} parent=0
    #allocation2 [shape = 'u8[4096]{0}', space=vmem, size = 0x1000, scoped, tag = 'input window, operand 0, single buffered']
    #allocation3 [shape = 's32[1]{0}', space=sflag, size = 0x4, scoped, tag = 'scoped memory for rce_loss.1']
    #allocation4 [shape = 's32[1]{0}', space=sflag, size = 0x4, scoped, tag = 'scoped memory for rce_loss.1']
    #allocation5 [shape = 'u8[4096]{0}', space=vmem, size = 0x1000, scoped, tag = 'input window, operand 1, single buffered']
    #allocation6 [shape = 's32[1]{0}', space=sflag, size = 0x4, scoped, tag = 'scoped memory for rce_loss.1']
    #allocation7 [shape = 'u8[512]{0}', space=vmem, size = 0x400, scoped, tag = 'output window, operand 2, single buffered']
    %11 = vsyncpa [#allocation3], 0
    %12 = vsyncpa [#allocation6], 0
    %13 = vsyncpa [#allocation4], 0
    // Predicated region
    $region2: #{rce_loss.1} parent=1 // pred_check
      _
    $region3: #{rce_loss.1} parent=1 // pred_check_branch
      %15 = sbr.rel (0) target = $region5
    $region4: #{rce_loss.1} parent=1 // pred_region
      %17 = vsyncadd [#allocation3], 0
      %s19 = sshll.u32 %s0, 4
      %s20 = int_to_ptr.hbm [resolvable:$true] %s19
      %s21 = sshll.u32 [#allocation2], 4
      %s22 = int_to_ptr.vmem [resolvable:$true] %s21
      %24 = dma.hbm_to_vmem [thread:$0]  %s20, 128, %s22, [#allocation3]
    $region5: #{rce_loss.1} parent=1 // pred_fallthru
      _
    // Predicated region
    $region6: #{rce_loss.1} parent=1 // pred_check
      _
    $region7: #{rce_loss.1} parent=1 // pred_check_branch
      %26 = sbr.rel (0) target = $region9
    $region8: #{rce_loss.1} parent=1 // pred_region
      %28 = vsyncadd [#allocation6], 0
      %s30 = sshll.u32 %s1, 4
      %s31 = int_to_ptr.hbm [resolvable:$true] %s30
      %s32 = sshll.u32 [#allocation5], 4
      %s33 = int_to_ptr.vmem [resolvable:$true] %s32
      %35 = dma.hbm_to_vmem [thread:$0]  %s31, 128, %s33, [#allocation6]
    $region9: #{rce_loss.1} parent=1 // pred_fallthru
      _
    // Predicated region
    $region10: #{rce_loss.1} parent=1 // pred_check
      _
    $region11: #{rce_loss.1} parent=1 // pred_check_branch
      %37 = sbr.rel (0) target = $region13
    $region12: #{rce_loss.1} parent=1 // pred_region
      %39 = dma.done [#allocation3], 128
    $region13: #{rce_loss.1} parent=1 // pred_fallthru
      _
    // Predicated region
    $region14: #{rce_loss.1} parent=1 // pred_check
      _
    $region15: #{rce_loss.1} parent=1 // pred_check_branch
      %41 = sbr.rel (0) target = $region17
    $region16: #{rce_loss.1} parent=1 // pred_region
      %43 = dma.done [#allocation6], 128
    $region17: #{rce_loss.1} parent=1 // pred_fallthru
      _
    %v44 = vld [vmem:[#allocation2] sm:$0xff]
    %v45 = vmul.f32 %v44, 10.0
    %vm46 = vcmask 64512
    %v47 = vsel %vm46, %v45, -inf
    %48 = vmax.xlane.f32.xlu0 %v47
    %v49 = vpop.xlane.xlu0 %48
    %v50 = vsub.f32 %v45, %v49
    %v51 = vmul.f32 %v50, 1.442695
    %v52 = vpow.pop %v51
    %v53 = vsel %vm46, %v52, 0.0
    %54 = vadd.xlane.f32.xlu0 %v53
    %v55 = vpop.xlane.xlu0 %54
    %v56 = vlog2.pop %v55
    %v57 = vmul.f32 %v56, 0.6931472
    %v58 = vadd.f32 %v49, %v57
    %vm59 = vcmask 7168
    %60 = vst.msk [vmem:[%s2] sm:$0xff] %vm59, %v58
    %v61 = vrot.slane %v49, 4
    %v62 = vmax.f32 %v49, %v61
    %v63 = vrot.slane %v62, 2
    %v64 = vmax.f32 %v62, %v63
    %v65 = vrot.slane %v64, 1
    %v66 = vmax.f32 %v64, %v65
    %v67 = vsub.f32 %v49, %v66
    %v68 = vmul.f32 %v67, 1.442695
    %v69 = vpow.pop %v68
    %vm70 = vcmask 0
    %71 = vst.msk [vmem:[#allocation7] sm:$0x1] %vm70, %v66
    %v72 = vmul.f32 %v52, %v69
    %v73 = vsel %vm46, %v72, 0.0
    %v74 = vrot.slane %v73, 4
    %v75 = vadd.f32 %v73, %v74
    %v76 = vrot.slane %v75, 2
    %v77 = vadd.f32 %v75, %v76
    %v78 = vrot.slane %v77, 1
    %v79 = vadd.f32 %v77, %v78
    %vm80 = vcmask 57344
    %81 = vst.msk [vmem:[%s5] sm:$0x1] %vm80, %v79
    %v82 = vld [vmem:[#allocation5] sm:$0xff]
    %v83 = vmul.f32 %v82, 10.0
    %v84 = vlaneseq
    %v85 = vshrl.u32 %v84, 7
    %v86 = vlaneseq
    %v87 = vand.u32 %v86, 127
    %vm88 = vcmp.eq.s32.totalorder %v85, %v87
    %v89 = vsel %vm88, %v83, 0.0
    %v90 = vsel %vm46, %v89, 0.0
    %91 = vadd.xlane.f32.xlu0 %v90
    %v92 = vpop.xlane.xlu0 %91
    %93 = vst.msk [vmem:[%s3] sm:$0xff] %vm59, %v92
    // Predicated region
    $region18: #{rce_loss.1} parent=1 // pred_check
      _
    $region19: #{rce_loss.1} parent=1 // pred_check_branch
      %95 = sbr.rel (0) target = $region21
    $region20: #{rce_loss.1} parent=1 // pred_region
      _
    $region21: #{rce_loss.1} parent=1 // pred_fallthru
      _
    // Predicated region
    $region22: #{rce_loss.1} parent=1 // pred_check
      _
    $region23: #{rce_loss.1} parent=1 // pred_check_branch
      %97 = sbr.rel (0) target = $region25
    $region24: #{rce_loss.1} parent=1 // pred_region
      _
    $region25: #{rce_loss.1} parent=1 // pred_fallthru
      _
    // Predicated region
    $region26: #{rce_loss.1} parent=1 // pred_check
      _
    $region27: #{rce_loss.1} parent=1 // pred_check_branch
      %99 = sbr.rel (0) target = $region29
    $region28: #{rce_loss.1} parent=1 // pred_region
      %101 = vsyncadd [#allocation4], 0
      %s103 = sshll.u32 [#allocation7], 4
      %s104 = int_to_ptr.vmem [resolvable:$true] %s103
      %s105 = sshll.u32 %s4, 4
      %s106 = int_to_ptr.hbm [resolvable:$true] %s105
      %108 = dma.vmem_to_hbm [thread:$0]  %s104, 16, %s106, [#allocation4]
    $region29: #{rce_loss.1} parent=1 // pred_fallthru
      _
    // Predicated region
    $region30: #{rce_loss.1} parent=1 // pred_check
      _
    $region31: #{rce_loss.1} parent=1 // pred_check_branch
      %110 = sbr.rel (0) target = $region33
    $region32: #{rce_loss.1} parent=1 // pred_region
      _
    $region33: #{rce_loss.1} parent=1 // pred_fallthru
      _
    // Predicated region
    $region34: #{rce_loss.1} parent=1 // pred_check
      _
    $region35: #{rce_loss.1} parent=1 // pred_check_branch
      %112 = sbr.rel (0) target = $region37
    $region36: #{rce_loss.1} parent=1 // pred_region
      _
    $region37: #{rce_loss.1} parent=1 // pred_fallthru
      _
    // Predicated region
    $region38: #{rce_loss.1} parent=1 // pred_check
      _
    $region39: #{rce_loss.1} parent=1 // pred_check_branch
      %114 = sbr.rel (0) target = $region41
    $region40: #{rce_loss.1} parent=1 // pred_region
      _
    $region41: #{rce_loss.1} parent=1 // pred_fallthru
      _
    // Predicated region
    $region42: #{rce_loss.1} parent=1 // pred_check
      _
    $region43: #{rce_loss.1} parent=1 // pred_check_branch
      %116 = sbr.rel (0) target = $region45
    $region44: #{rce_loss.1} parent=1 // pred_region
      %118 = dma.done [#allocation4], 16
    $region45: #{rce_loss.1} parent=1 // pred_fallthru
      _
    // Predicated region
    $region46: #{rce_loss.1} parent=1 // pred_check
      _
    $region47: #{rce_loss.1} parent=1 // pred_check_branch
      %120 = sbr.rel (0) target = $region49
    $region48: #{rce_loss.1} parent=1 // pred_region
      _
    $region49: #{rce_loss.1} parent=1 // pred_fallthru
      _
    %121 = vsyncpa [#allocation3], 1
    %122 = vsyncpa [#allocation6], 1
    %123 = vsyncpa [#allocation4], 1

</llo_original>
